<compile_context>
chip_gen: v5e
topology: v5e:2x2
jax: 0.10.0
libtpu: 0.0.40
codegen_flags: <defaults>
</compile_context>

<pallas_src>
import jax
import jax.numpy as jnp
from jax.experimental import pallas as pl
from jax.experimental.pallas import tpu as pltpu


def _sigmoid(z):
    # 1 / (1 + exp(-z)): exp and the approximate reciprocal both land on the
    # EUP slot, keeping the VALU slots free for the FMA chain.
    return pl.reciprocal(1.0 + jnp.exp(-z), approx=True)


def _layer(h, w, b):
    # h: (k, tile_n)  activations, batch on the lane axis
    # w: (m, k)       PyTorch Linear weight (out_features, in_features)
    # b: (m, 1)       bias, broadcast over lanes
    m, k = w.shape
    acc = jnp.broadcast_to(b, (m, h.shape[1]))
    for j in range(k):  # K <= 8: unrolled VPU broadcast-multiply-accumulates
        acc = acc + w[:, j:j + 1] * h[j:j + 1, :]
    return _sigmoid(acc)


def _mlp_kernel(x_ref, w1_ref, b1_ref, w2_ref, b2_ref, w3_ref, b3_ref, o_ref):
    h = _layer(x_ref[...], w1_ref[...], b1_ref[...])  # (6, tile_n)
    h = _layer(h, w2_ref[...], b2_ref[...])           # (4, tile_n)
    h = _layer(h, w3_ref[...], b3_ref[...])           # (1, tile_n)
    o_ref[...] = h.astype(o_ref.dtype)


def mlp_forward(x, params, *, tile_n=512):
    """x: (N, 8) float32. params = (w1,b1,w2,b2,w3,b3), w: (out,in), b: (out,1)."""
    w1, b1, w2, b2, w3, b3 = params
    n = x.shape[0]
    # Lane-dense tiles: tile_n is a multiple of 128; pad N up to a tile multiple.
    tile_n = min(tile_n, pl.cdiv(n, 128) * 128)
    n_pad = pl.cdiv(n, tile_n) * tile_n
    xt = jnp.pad(x.T.astype(jnp.float32), ((0, 0), (0, n_pad - n)))

    grid = (n_pad // tile_n,)
    const = lambda a: pl.BlockSpec(a.shape, lambda i: (0, 0))  # weights stay resident

    flops = 2 * n_pad * (8 * 6 + 6 * 4 + 4 * 1)
    transcendentals = 2 * n_pad * (6 + 4 + 1)          # exp + reciprocal per unit
    bytes_accessed = 4 * (n_pad * (8 + 1) + 6 * 8 + 6 + 4 * 6 + 4 + 1 * 4 + 1)

    out_t = pl.pallas_call(
        _mlp_kernel,
        out_shape=jax.ShapeDtypeStruct((1, n_pad), jnp.float32),
        grid=grid,
        in_specs=[
            pl.BlockSpec((8, tile_n), lambda i: (0, i)),
            const(w1), const(b1), const(w2), const(b2), const(w3), const(b3),
        ],
        out_specs=pl.BlockSpec((1, tile_n), lambda i: (0, i)),
        compiler_params=pltpu.CompilerParams(
            dimension_semantics=("parallel",),
        ),
        cost_estimate=pl.CostEstimate(
            flops=flops,
            transcendentals=transcendentals,
            bytes_accessed=bytes_accessed,
        ),
    )(xt, w1, b1, w2, b2, w3, b3)
    return out_t[:, :n].T  # (N, 1)


def init_params(key):
    """Mirror torch.nn.Linear init: U[-1/sqrt(fan_in), +1/sqrt(fan_in)].
    Weights stored (out_features, in_features), biases (out_features, 1)."""
    dims = [(8, 6), (6, 4), (4, 1)]
    params = []
    for fan_in, fan_out in dims:
        key, kw, kb = jax.random.split(key, 3)
        bound = 1.0 / jnp.sqrt(fan_in)
        w = jax.random.uniform(kw, (fan_out, fan_in), jnp.float32, -bound, bound)
        b = jax.random.uniform(kb, (fan_out, 1), jnp.float32, -bound, bound)
        params.extend([w, b])
    return tuple(params)


def reference_forward(x, params):
    w1, b1, w2, b2, w3, b3 = params
    h = jax.nn.sigmoid(x @ w1.T + b1[:, 0])
    h = jax.nn.sigmoid(h @ w2.T + b2[:, 0])
    return jax.nn.sigmoid(h @ w3.T + b3[:, 0])


if __name__ == "__main__":
    key = jax.random.PRNGKey(0)
    key, kx = jax.random.split(key)
    params = init_params(key)

    # Small case matching the module's (batch, 8) input.
    x_small = jax.random.normal(kx, (8, 8), jnp.float32)
    out_small = jax.block_until_ready(mlp_forward(x_small, params))
    ref_small = reference_forward(x_small, params)
    assert out_small.shape == (8, 1)
    # approx reciprocal in sigmoid => ~2^-12 relative error; loosen tolerance.
    assert jnp.allclose(out_small, ref_small, atol=2e-3)

    # Larger batch to exercise the gridded, double-buffered path (grid=(2,)).
    key, kx2 = jax.random.split(key)
    x_big = jax.random.normal(kx2, (1000, 8), jnp.float32)
    out_big = jax.block_until_ready(mlp_forward(x_big, params))
    ref_big = reference_forward(x_big, params)
    assert out_big.shape == (1000, 1)
    assert jnp.allclose(out_big, ref_big, atol=2e-3)

    print("KERNEL_OK")
</pallas_src>

<mosaic_0001>
module attributes {stable_mosaic.version = 11 : i64} {
  func.func @_mlp_kernel(%arg0: i32, %arg1: memref<8x128xf32, #tpu.memory_space<vmem>>, %arg2: memref<6x8xf32, #tpu.memory_space<vmem>>, %arg3: memref<6x1xf32, #tpu.memory_space<vmem>>, %arg4: memref<4x6xf32, #tpu.memory_space<vmem>>, %arg5: memref<4x1xf32, #tpu.memory_space<vmem>>, %arg6: memref<1x4xf32, #tpu.memory_space<vmem>>, %arg7: memref<1x1xf32, #tpu.memory_space<vmem>>, %arg8: memref<1x128xf32, #tpu.memory_space<vmem>>) attributes {dimension_semantics = [#tpu.dimension_semantics<parallel>], iteration_bounds = array<i64: 1>, scalar_prefetch = 0 : i64, scratch_operands = 0 : i64, tpu.core_type = #tpu.core_type<tc>, window_params = [{transform_indices = @transform_0, window_bounds = array<i64: 8, 128>}, {pipeline_mode = #tpu.pipeline_mode<synchronous>, transform_indices = @transform_1, window_bounds = array<i64: 6, 8>}, {pipeline_mode = #tpu.pipeline_mode<synchronous>, transform_indices = @transform_2, window_bounds = array<i64: 6, 1>}, {pipeline_mode = #tpu.pipeline_mode<synchronous>, transform_indices = @transform_3, window_bounds = array<i64: 4, 6>}, {pipeline_mode = #tpu.pipeline_mode<synchronous>, transform_indices = @transform_4, window_bounds = array<i64: 4, 1>}, {pipeline_mode = #tpu.pipeline_mode<synchronous>, transform_indices = @transform_5, window_bounds = array<i64: 1, 4>}, {pipeline_mode = #tpu.pipeline_mode<synchronous>, transform_indices = @transform_6, window_bounds = array<i64: 1, 1>}, {transform_indices = @transform_7, window_bounds = array<i64: 1, 128>}]} {
    %c0 = arith.constant 0 : index
    %c0_0 = arith.constant 0 : index
    %0 = vector.load %arg1[%c0, %c0_0] : memref<8x128xf32, #tpu.memory_space<vmem>>, vector<8x128xf32>
    %c0_1 = arith.constant 0 : index
    %c0_2 = arith.constant 0 : index
    %1 = vector.load %arg2[%c0_1, %c0_2] : memref<6x8xf32, #tpu.memory_space<vmem>>, vector<6x8xf32>
    %c0_3 = arith.constant 0 : index
    %c0_4 = arith.constant 0 : index
    %2 = vector.load %arg3[%c0_3, %c0_4] : memref<6x1xf32, #tpu.memory_space<vmem>>, vector<6x1xf32>
    %3 = vector.shape_cast %2 : vector<6x1xf32> to vector<6x1xf32>
    %4 = vector.broadcast %3 : vector<6x1xf32> to vector<6x128xf32>
    %5 = vector.extract_strided_slice %1 {offsets = [0, 0], sizes = [6, 1], strides = [1, 1]} : vector<6x8xf32> to vector<6x1xf32>
    %6 = vector.extract_strided_slice %0 {offsets = [0, 0], sizes = [1, 128], strides = [1, 1]} : vector<8x128xf32> to vector<1x128xf32>
    %7 = vector.broadcast %5 : vector<6x1xf32> to vector<6x128xf32>
    %8 = vector.broadcast %6 : vector<1x128xf32> to vector<6x128xf32>
    %9 = arith.mulf %7, %8 : vector<6x128xf32>
    %10 = arith.addf %4, %9 : vector<6x128xf32>
    %11 = vector.extract_strided_slice %1 {offsets = [0, 1], sizes = [6, 1], strides = [1, 1]} : vector<6x8xf32> to vector<6x1xf32>
    %12 = vector.extract_strided_slice %0 {offsets = [1, 0], sizes = [1, 128], strides = [1, 1]} : vector<8x128xf32> to vector<1x128xf32>
    %13 = vector.broadcast %11 : vector<6x1xf32> to vector<6x128xf32>
    %14 = vector.broadcast %12 : vector<1x128xf32> to vector<6x128xf32>
    %15 = arith.mulf %13, %14 : vector<6x128xf32>
    %16 = arith.addf %10, %15 : vector<6x128xf32>
    %17 = vector.extract_strided_slice %1 {offsets = [0, 2], sizes = [6, 1], strides = [1, 1]} : vector<6x8xf32> to vector<6x1xf32>
    %18 = vector.extract_strided_slice %0 {offsets = [2, 0], sizes = [1, 128], strides = [1, 1]} : vector<8x128xf32> to vector<1x128xf32>
    %19 = vector.broadcast %17 : vector<6x1xf32> to vector<6x128xf32>
    %20 = vector.broadcast %18 : vector<1x128xf32> to vector<6x128xf32>
    %21 = arith.mulf %19, %20 : vector<6x128xf32>
    %22 = arith.addf %16, %21 : vector<6x128xf32>
    %23 = vector.extract_strided_slice %1 {offsets = [0, 3], sizes = [6, 1], strides = [1, 1]} : vector<6x8xf32> to vector<6x1xf32>
    %24 = vector.extract_strided_slice %0 {offsets = [3, 0], sizes = [1, 128], strides = [1, 1]} : vector<8x128xf32> to vector<1x128xf32>
    %25 = vector.broadcast %23 : vector<6x1xf32> to vector<6x128xf32>
    %26 = vector.broadcast %24 : vector<1x128xf32> to vector<6x128xf32>
    %27 = arith.mulf %25, %26 : vector<6x128xf32>
    %28 = arith.addf %22, %27 : vector<6x128xf32>
    %29 = vector.extract_strided_slice %1 {offsets = [0, 4], sizes = [6, 1], strides = [1, 1]} : vector<6x8xf32> to vector<6x1xf32>
    %30 = vector.extract_strided_slice %0 {offsets = [4, 0], sizes = [1, 128], strides = [1, 1]} : vector<8x128xf32> to vector<1x128xf32>
    %31 = vector.broadcast %29 : vector<6x1xf32> to vector<6x128xf32>
    %32 = vector.broadcast %30 : vector<1x128xf32> to vector<6x128xf32>
    %33 = arith.mulf %31, %32 : vector<6x128xf32>
    %34 = arith.addf %28, %33 : vector<6x128xf32>
    %35 = vector.extract_strided_slice %1 {offsets = [0, 5], sizes = [6, 1], strides = [1, 1]} : vector<6x8xf32> to vector<6x1xf32>
    %36 = vector.extract_strided_slice %0 {offsets = [5, 0], sizes = [1, 128], strides = [1, 1]} : vector<8x128xf32> to vector<1x128xf32>
    %37 = vector.broadcast %35 : vector<6x1xf32> to vector<6x128xf32>
    %38 = vector.broadcast %36 : vector<1x128xf32> to vector<6x128xf32>
    %39 = arith.mulf %37, %38 : vector<6x128xf32>
    %40 = arith.addf %34, %39 : vector<6x128xf32>
    %41 = vector.extract_strided_slice %1 {offsets = [0, 6], sizes = [6, 1], strides = [1, 1]} : vector<6x8xf32> to vector<6x1xf32>
    %42 = vector.extract_strided_slice %0 {offsets = [6, 0], sizes = [1, 128], strides = [1, 1]} : vector<8x128xf32> to vector<1x128xf32>
    %43 = vector.broadcast %41 : vector<6x1xf32> to vector<6x128xf32>
    %44 = vector.broadcast %42 : vector<1x128xf32> to vector<6x128xf32>
    %45 = arith.mulf %43, %44 : vector<6x128xf32>
    %46 = arith.addf %40, %45 : vector<6x128xf32>
    %47 = vector.extract_strided_slice %1 {offsets = [0, 7], sizes = [6, 1], strides = [1, 1]} : vector<6x8xf32> to vector<6x1xf32>
    %48 = vector.extract_strided_slice %0 {offsets = [7, 0], sizes = [1, 128], strides = [1, 1]} : vector<8x128xf32> to vector<1x128xf32>
    %49 = vector.broadcast %47 : vector<6x1xf32> to vector<6x128xf32>
    %50 = vector.broadcast %48 : vector<1x128xf32> to vector<6x128xf32>
    %51 = arith.mulf %49, %50 : vector<6x128xf32>
    %52 = arith.addf %46, %51 : vector<6x128xf32>
    %cst = arith.constant 0.000000e+00 : f32
    %53 = vector.broadcast %cst : f32 to vector<6x128xf32>
    %54 = arith.subf %53, %52 : vector<6x128xf32>
    %55 = math.exp %54 : vector<6x128xf32>
    %cst_5 = arith.constant 1.000000e+00 : f32
    %56 = vector.broadcast %cst_5 : f32 to vector<6x128xf32>
    %57 = arith.addf %56, %55 : vector<6x128xf32>
    %58 = tpu.reciprocal %57 {approx = true} : vector<6x128xf32> -> vector<6x128xf32>
    %c0_6 = arith.constant 0 : index
    %c0_7 = arith.constant 0 : index
    %59 = vector.load %arg4[%c0_6, %c0_7] : memref<4x6xf32, #tpu.memory_space<vmem>>, vector<4x6xf32>
    %c0_8 = arith.constant 0 : index
    %c0_9 = arith.constant 0 : index
    %60 = vector.load %arg5[%c0_8, %c0_9] : memref<4x1xf32, #tpu.memory_space<vmem>>, vector<4x1xf32>
    %61 = vector.shape_cast %60 : vector<4x1xf32> to vector<4x1xf32>
    %62 = vector.broadcast %61 : vector<4x1xf32> to vector<4x128xf32>
    %63 = vector.extract_strided_slice %59 {offsets = [0, 0], sizes = [4, 1], strides = [1, 1]} : vector<4x6xf32> to vector<4x1xf32>
    %64 = vector.extract_strided_slice %58 {offsets = [0, 0], sizes = [1, 128], strides = [1, 1]} : vector<6x128xf32> to vector<1x128xf32>
    %65 = vector.broadcast %63 : vector<4x1xf32> to vector<4x128xf32>
    %66 = vector.broadcast %64 : vector<1x128xf32> to vector<4x128xf32>
    %67 = arith.mulf %65, %66 : vector<4x128xf32>
    %68 = arith.addf %62, %67 : vector<4x128xf32>
    %69 = vector.extract_strided_slice %59 {offsets = [0, 1], sizes = [4, 1], strides = [1, 1]} : vector<4x6xf32> to vector<4x1xf32>
    %70 = vector.extract_strided_slice %58 {offsets = [1, 0], sizes = [1, 128], strides = [1, 1]} : vector<6x128xf32> to vector<1x128xf32>
    %71 = vector.broadcast %69 : vector<4x1xf32> to vector<4x128xf32>
    %72 = vector.broadcast %70 : vector<1x128xf32> to vector<4x128xf32>
    %73 = arith.mulf %71, %72 : vector<4x128xf32>
    %74 = arith.addf %68, %73 : vector<4x128xf32>
    %75 = vector.extract_strided_slice %59 {offsets = [0, 2], sizes = [4, 1], strides = [1, 1]} : vector<4x6xf32> to vector<4x1xf32>
    %76 = vector.extract_strided_slice %58 {offsets = [2, 0], sizes = [1, 128], strides = [1, 1]} : vector<6x128xf32> to vector<1x128xf32>
    %77 = vector.broadcast %75 : vector<4x1xf32> to vector<4x128xf32>
    %78 = vector.broadcast %76 : vector<1x128xf32> to vector<4x128xf32>
    %79 = arith.mulf %77, %78 : vector<4x128xf32>
    %80 = arith.addf %74, %79 : vector<4x128xf32>
    %81 = vector.extract_strided_slice %59 {offsets = [0, 3], sizes = [4, 1], strides = [1, 1]} : vector<4x6xf32> to vector<4x1xf32>
    %82 = vector.extract_strided_slice %58 {offsets = [3, 0], sizes = [1, 128], strides = [1, 1]} : vector<6x128xf32> to vector<1x128xf32>
    %83 = vector.broadcast %81 : vector<4x1xf32> to vector<4x128xf32>
    %84 = vector.broadcast %82 : vector<1x128xf32> to vector<4x128xf32>
    %85 = arith.mulf %83, %84 : vector<4x128xf32>
    %86 = arith.addf %80, %85 : vector<4x128xf32>
    %87 = vector.extract_strided_slice %59 {offsets = [0, 4], sizes = [4, 1], strides = [1, 1]} : vector<4x6xf32> to vector<4x1xf32>
    %88 = vector.extract_strided_slice %58 {offsets = [4, 0], sizes = [1, 128], strides = [1, 1]} : vector<6x128xf32> to vector<1x128xf32>
    %89 = vector.broadcast %87 : vector<4x1xf32> to vector<4x128xf32>
    %90 = vector.broadcast %88 : vector<1x128xf32> to vector<4x128xf32>
    %91 = arith.mulf %89, %90 : vector<4x128xf32>
    %92 = arith.addf %86, %91 : vector<4x128xf32>
    %93 = vector.extract_strided_slice %59 {offsets = [0, 5], sizes = [4, 1], strides = [1, 1]} : vector<4x6xf32> to vector<4x1xf32>
    %94 = vector.extract_strided_slice %58 {offsets = [5, 0], sizes = [1, 128], strides = [1, 1]} : vector<6x128xf32> to vector<1x128xf32>
    %95 = vector.broadcast %93 : vector<4x1xf32> to vector<4x128xf32>
    %96 = vector.broadcast %94 : vector<1x128xf32> to vector<4x128xf32>
    %97 = arith.mulf %95, %96 : vector<4x128xf32>
    %98 = arith.addf %92, %97 : vector<4x128xf32>
    %cst_10 = arith.constant 0.000000e+00 : f32
    %99 = vector.broadcast %cst_10 : f32 to vector<4x128xf32>
    %100 = arith.subf %99, %98 : vector<4x128xf32>
    %101 = math.exp %100 : vector<4x128xf32>
    %cst_11 = arith.constant 1.000000e+00 : f32
    %102 = vector.broadcast %cst_11 : f32 to vector<4x128xf32>
    %103 = arith.addf %102, %101 : vector<4x128xf32>
    %104 = tpu.reciprocal %103 {approx = true} : vector<4x128xf32> -> vector<4x128xf32>
    %c0_12 = arith.constant 0 : index
    %c0_13 = arith.constant 0 : index
    %105 = vector.load %arg6[%c0_12, %c0_13] : memref<1x4xf32, #tpu.memory_space<vmem>>, vector<1x4xf32>
    %c0_14 = arith.constant 0 : index
    %c0_15 = arith.constant 0 : index
    %106 = vector.load %arg7[%c0_14, %c0_15] : memref<1x1xf32, #tpu.memory_space<vmem>>, vector<1x1xf32>
    %107 = vector.shape_cast %106 : vector<1x1xf32> to vector<1x1xf32>
    %108 = vector.broadcast %107 : vector<1x1xf32> to vector<1x128xf32>
    %109 = vector.extract_strided_slice %105 {offsets = [0, 0], sizes = [1, 1], strides = [1, 1]} : vector<1x4xf32> to vector<1x1xf32>
    %110 = vector.extract_strided_slice %104 {offsets = [0, 0], sizes = [1, 128], strides = [1, 1]} : vector<4x128xf32> to vector<1x128xf32>
    %111 = vector.broadcast %109 : vector<1x1xf32> to vector<1x128xf32>
    %112 = arith.mulf %111, %110 : vector<1x128xf32>
    %113 = arith.addf %108, %112 : vector<1x128xf32>
    %114 = vector.extract_strided_slice %105 {offsets = [0, 1], sizes = [1, 1], strides = [1, 1]} : vector<1x4xf32> to vector<1x1xf32>
    %115 = vector.extract_strided_slice %104 {offsets = [1, 0], sizes = [1, 128], strides = [1, 1]} : vector<4x128xf32> to vector<1x128xf32>
    %116 = vector.broadcast %114 : vector<1x1xf32> to vector<1x128xf32>
    %117 = arith.mulf %116, %115 : vector<1x128xf32>
    %118 = arith.addf %113, %117 : vector<1x128xf32>
    %119 = vector.extract_strided_slice %105 {offsets = [0, 2], sizes = [1, 1], strides = [1, 1]} : vector<1x4xf32> to vector<1x1xf32>
    %120 = vector.extract_strided_slice %104 {offsets = [2, 0], sizes = [1, 128], strides = [1, 1]} : vector<4x128xf32> to vector<1x128xf32>
    %121 = vector.broadcast %119 : vector<1x1xf32> to vector<1x128xf32>
    %122 = arith.mulf %121, %120 : vector<1x128xf32>
    %123 = arith.addf %118, %122 : vector<1x128xf32>
    %124 = vector.extract_strided_slice %105 {offsets = [0, 3], sizes = [1, 1], strides = [1, 1]} : vector<1x4xf32> to vector<1x1xf32>
    %125 = vector.extract_strided_slice %104 {offsets = [3, 0], sizes = [1, 128], strides = [1, 1]} : vector<4x128xf32> to vector<1x128xf32>
    %126 = vector.broadcast %124 : vector<1x1xf32> to vector<1x128xf32>
    %127 = arith.mulf %126, %125 : vector<1x128xf32>
    %128 = arith.addf %123, %127 : vector<1x128xf32>
    %cst_16 = arith.constant 0.000000e+00 : f32
    %129 = vector.broadcast %cst_16 : f32 to vector<1x128xf32>
    %130 = arith.subf %129, %128 : vector<1x128xf32>
    %131 = math.exp %130 : vector<1x128xf32>
    %cst_17 = arith.constant 1.000000e+00 : f32
    %132 = vector.broadcast %cst_17 : f32 to vector<1x128xf32>
    %133 = arith.addf %132, %131 : vector<1x128xf32>
    %134 = tpu.reciprocal %133 {approx = true} : vector<1x128xf32> -> vector<1x128xf32>
    %c0_18 = arith.constant 0 : index
    %c0_19 = arith.constant 0 : index
    %135 = vector.load %arg8[%c0_18, %c0_19] : memref<1x128xf32, #tpu.memory_space<vmem>>, vector<1x128xf32>
    tpu.vector_store %arg8[%c0_18, %c0_19], %134 {strides = array<i32>} : memref<1x128xf32, #tpu.memory_space<vmem>>, vector<1x128xf32>,
    return
  }
  func.func @transform_0(%arg0: i32) -> (i32, i32) {
    %c0_i32 = arith.constant 0 : i32
    %c0_i32_0 = arith.constant 0 : i32
    return %c0_i32, %arg0 : i32, i32
  }
  func.func @transform_1(%arg0: i32) -> (i32, i32) {
    %c0_i32 = arith.constant 0 : i32
    %c0_i32_0 = arith.constant 0 : i32
    %c0_i32_1 = arith.constant 0 : i32
    return %c0_i32, %c0_i32_0 : i32, i32
  }
  func.func @transform_2(%arg0: i32) -> (i32, i32) {
    %c0_i32 = arith.constant 0 : i32
    %c0_i32_0 = arith.constant 0 : i32
    %c0_i32_1 = arith.constant 0 : i32
    return %c0_i32, %c0_i32_0 : i32, i32
  }
  func.func @transform_3(%arg0: i32) -> (i32, i32) {
    %c0_i32 = arith.constant 0 : i32
    %c0_i32_0 = arith.constant 0 : i32
    %c0_i32_1 = arith.constant 0 : i32
    return %c0_i32, %c0_i32_0 : i32, i32
  }
  func.func @transform_4(%arg0: i32) -> (i32, i32) {
    %c0_i32 = arith.constant 0 : i32
    %c0_i32_0 = arith.constant 0 : i32
    %c0_i32_1 = arith.constant 0 : i32
    return %c0_i32, %c0_i32_0 : i32, i32
  }
  func.func @transform_5(%arg0: i32) -> (i32, i32) {
    %c0_i32 = arith.constant 0 : i32
    %c0_i32_0 = arith.constant 0 : i32
    %c0_i32_1 = arith.constant 0 : i32
    return %c0_i32, %c0_i32_0 : i32, i32
  }
  func.func @transform_6(%arg0: i32) -> (i32, i32) {
    %c0_i32 = arith.constant 0 : i32
    %c0_i32_0 = arith.constant 0 : i32
    %c0_i32_1 = arith.constant 0 : i32
    return %c0_i32, %c0_i32_0 : i32, i32
  }
  func.func @transform_7(%arg0: i32) -> (i32, i32) {
    %c0_i32 = arith.constant 0 : i32
    %c0_i32_0 = arith.constant 0 : i32
    return %c0_i32, %arg0 : i32, i32
  }
}

</mosaic_0001>

<llo_original>
// kernel: tpu_custom_call.1
$region0: #{tpu_custom_call.1}
  #allocation0 [shape = 'u32[]', space=smem, size = 0x4, offset = 0x4, fixed_abs, tag = 'smem constant byte address 0x4 - core index']
  #allocation1 [shape = 'u32[72,128]{1,0:T(1,128)}', space=vmem, size = 0x9000, scoped, tag = 'internal scratch']
  #allocation2 [shape = 'f32[1,1]{1,0:T(1,128)S(1)}', space=vmem, size = 0x200, scoped, tag = 'scoped memory for tpu_custom_call.1']
  %s0 = inlined_call_operand.vmem [shape: f32[8,128], index: 0, kind: input, shape index: {}]
  %s1 = inlined_call_operand.vmem [shape: f32[6,8], index: 1, kind: input, shape index: {}]
  %s2 = inlined_call_operand.vmem [shape: f32[6,1], index: 2, kind: input, shape index: {}]
  %s3 = inlined_call_operand.hbm [shape: f32[4,6], index: 3, kind: input, shape index: {}]
  %s4 = inlined_call_operand.vmem [shape: f32[4,1], index: 4, kind: input, shape index: {}]
  %s5 = inlined_call_operand.vmem [shape: f32[1,4], index: 5, kind: input, shape index: {}]
  %s6 = inlined_call_operand.<no memory space> [shape: f32[1,1], index: 6, kind: input, shape index: {}]
  %s7 = inlined_call_operand.hbm [shape: f32[1,128], index: 7, kind: output, shape index: {}]
  %s8 = sld [smem:[#allocation0]]
  $region42: #{tpu_custom_call.1} parent=0
    _
  %s10 = ssub.s32 1, %s8
  %s11 = scalar_select 0, %s10, %s8
  %v12 = vstv %s6
  %13 = vst [vmem:[#allocation2] sm:$0x1] %v12
  $region1: #{tpu_custom_call.1} parent=0
    #allocation3 [shape = 'u8[2048]{0}', space=vmem, size = 0x800, scoped, tag = 'input window, operand 3, single buffered']
    #allocation4 [shape = 's32[1]{0}', space=sflag, size = 0x4, scoped, tag = 'scoped memory for tpu_custom_call.1']
    #allocation5 [shape = 's32[1]{0}', space=sflag, size = 0x4, scoped, tag = 'scoped memory for tpu_custom_call.1']
    #allocation6 [shape = 'u8[512]{0}', space=vmem, size = 0x400, scoped, tag = 'output window, operand 0, single buffered']
    %14 = vsyncpa [#allocation4], 0
    %15 = vsyncpa [#allocation5], 0
    // Predicated region
    $region2: #{tpu_custom_call.1} parent=1 // pred_check
      _
    $region3: #{tpu_custom_call.1} parent=1 // pred_check_branch
      %17 = sbr.rel (0) target = $region5
    $region4: #{tpu_custom_call.1} parent=1 // pred_region
      _
    $region5: #{tpu_custom_call.1} parent=1 // pred_fallthru
      _
    // Predicated region
    $region6: #{tpu_custom_call.1} parent=1 // pred_check
      _
    $region7: #{tpu_custom_call.1} parent=1 // pred_check_branch
      %19 = sbr.rel (0) target = $region9
    $region8: #{tpu_custom_call.1} parent=1 // pred_region
      _
    $region9: #{tpu_custom_call.1} parent=1 // pred_fallthru
      _
    // Predicated region
    $region10: #{tpu_custom_call.1} parent=1 // pred_check
      _
    $region11: #{tpu_custom_call.1} parent=1 // pred_check_branch
      %21 = sbr.rel (0) target = $region13
    $region12: #{tpu_custom_call.1} parent=1 // pred_region
      _
    $region13: #{tpu_custom_call.1} parent=1 // pred_fallthru
      _
    // Predicated region
    $region14: #{tpu_custom_call.1} parent=1 // pred_check
      _
    $region15: #{tpu_custom_call.1} parent=1 // pred_check_branch
      %23 = sbr.rel (0) target = $region17
    $region16: #{tpu_custom_call.1} parent=1 // pred_region
      %25 = vsyncadd [#allocation4], 0
      %s27 = sshll.u32 %s3, 4
      %s28 = int_to_ptr.hbm [resolvable:$true] %s27
      %s29 = sshll.u32 [#allocation3], 4
      %s30 = int_to_ptr.vmem [resolvable:$true] %s29
      %32 = dma.hbm_to_vmem [thread:$0]  %s28, 64, %s30, [#allocation4]
    $region17: #{tpu_custom_call.1} parent=1 // pred_fallthru
      _
    // Predicated region
    $region18: #{tpu_custom_call.1} parent=1 // pred_check
      _
    $region19: #{tpu_custom_call.1} parent=1 // pred_check_branch
      %34 = sbr.rel (0) target = $region21
    $region20: #{tpu_custom_call.1} parent=1 // pred_region
      _
    $region21: #{tpu_custom_call.1} parent=1 // pred_fallthru
      _
    // Predicated region
    $region22: #{tpu_custom_call.1} parent=1 // pred_check
      _
    $region23: #{tpu_custom_call.1} parent=1 // pred_check_branch
      %36 = sbr.rel (0) target = $region25
    $region24: #{tpu_custom_call.1} parent=1 // pred_region
      _
    $region25: #{tpu_custom_call.1} parent=1 // pred_fallthru
      _
    // Predicated region
    $region26: #{tpu_custom_call.1} parent=1 // pred_check
      _
    $region27: #{tpu_custom_call.1} parent=1 // pred_check_branch
      %38 = sbr.rel (0) target = $region29
    $region28: #{tpu_custom_call.1} parent=1 // pred_region
      _
    $region29: #{tpu_custom_call.1} parent=1 // pred_fallthru
      _
    // Predicated region
    $region30: #{tpu_custom_call.1} parent=1 // pred_check
      _
    $region31: #{tpu_custom_call.1} parent=1 // pred_check_branch
      %40 = sbr.rel (0) target = $region33
    $region32: #{tpu_custom_call.1} parent=1 // pred_region
      %42 = dma.done [#allocation4], 64
    $region33: #{tpu_custom_call.1} parent=1 // pred_fallthru
      _
    %v43 = vld [vmem:[%s0] sm:$0xff]
    %v44 = vld [vmem:[%s1] sm:$0x3f]
    %v45 = vld [vmem:[%s2] sm:$0x3f]
    %47 = vset.pattern.permute.xlu0 0
    %48 = vperm.xlu0 %47, %v45
    %v49 = vpop.permute.xlu0 %48
    %52 = vset.pattern.permute.xlu0 0
    %53 = vperm.xlu0 %52, %v44
    %v54 = vpop.permute.xlu0 %53
    %v56 = vperm.slane %v43, 0
    %v57 = vmul.f32 %v54, %v56
    %v58 = vadd.f32 %v49, %v57
    %59 = vset.pattern.permute.xlu0 1
    %60 = vperm.xlu0 %59, %v44
    %v61 = vpop.permute.xlu0 %60
    %v63 = vperm.slane %v43, 1
    %v64 = vmul.f32 %v61, %v63
    %v65 = vadd.f32 %v58, %v64
    %66 = vset.pattern.permute.xlu0 2
    %67 = vperm.xlu0 %66, %v44
    %v68 = vpop.permute.xlu0 %67
    %v70 = vperm.slane %v43, 2
    %v71 = vmul.f32 %v68, %v70
    %v72 = vadd.f32 %v65, %v71
    %73 = vset.pattern.permute.xlu0 3
    %74 = vperm.xlu0 %73, %v44
    %v75 = vpop.permute.xlu0 %74
    %v77 = vperm.slane %v43, 3
    %v78 = vmul.f32 %v75, %v77
    %v79 = vadd.f32 %v72, %v78
    %80 = vset.pattern.permute.xlu0 4
    %81 = vperm.xlu0 %80, %v44
    %v82 = vpop.permute.xlu0 %81
    %v84 = vperm.slane %v43, 4
    %v85 = vmul.f32 %v82, %v84
    %v86 = vadd.f32 %v79, %v85
    %87 = vset.pattern.permute.xlu0 5
    %88 = vperm.xlu0 %87, %v44
    %v89 = vpop.permute.xlu0 %88
    %v91 = vperm.slane %v43, 5
    %v92 = vmul.f32 %v89, %v91
    %v93 = vadd.f32 %v86, %v92
    %94 = vset.pattern.permute.xlu0 6
    %95 = vperm.xlu0 %94, %v44
    %v96 = vpop.permute.xlu0 %95
    %v98 = vperm.slane %v43, 6
    %v99 = vmul.f32 %v96, %v98
    %v100 = vadd.f32 %v93, %v99
    %101 = vset.pattern.permute.xlu0 7
    %102 = vperm.xlu0 %101, %v44
    %v103 = vpop.permute.xlu0 %102
    %v105 = vperm.slane %v43, 7
    %v106 = vmul.f32 %v103, %v105
    %v107 = vadd.f32 %v100, %v106
    %v108 = vsub.f32 0.0, %v107
    %v109 = vmul.f32 %v108, 1.442695
    %v110 = vpow.pop %v109
    %v111 = vadd.f32 %v110, 1.0
    %v112 = vrcp.pop %v111
    %v113 = vld [vmem:[#allocation3] sm:$0xf]
    %v114 = vld [vmem:[%s4] sm:$0xf]
    %116 = vset.pattern.permute.xlu0 0
    %117 = vperm.xlu0 %116, %v114
    %v118 = vpop.permute.xlu0 %117
    %121 = vset.pattern.permute.xlu0 0
    %122 = vperm.xlu0 %121, %v113
    %v123 = vpop.permute.xlu0 %122
    %v125 = vperm.slane %v112, 0
    %v126 = vmul.f32 %v123, %v125
    %v127 = vadd.f32 %v118, %v126
    %128 = vset.pattern.permute.xlu0 1
    %129 = vperm.xlu0 %128, %v113
    %v130 = vpop.permute.xlu0 %129
    %v132 = vperm.slane %v112, 1
    %v133 = vmul.f32 %v130, %v132
    %v134 = vadd.f32 %v127, %v133
    %135 = vset.pattern.permute.xlu0 2
    %136 = vperm.xlu0 %135, %v113
    %v137 = vpop.permute.xlu0 %136
    %v139 = vperm.slane %v112, 2
    %v140 = vmul.f32 %v137, %v139
    %v141 = vadd.f32 %v134, %v140
    %142 = vset.pattern.permute.xlu0 3
    %143 = vperm.xlu0 %142, %v113
    %v144 = vpop.permute.xlu0 %143
    %v146 = vperm.slane %v112, 3
    %v147 = vmul.f32 %v144, %v146
    %v148 = vadd.f32 %v141, %v147
    %149 = vset.pattern.permute.xlu0 4
    %150 = vperm.xlu0 %149, %v113
    %v151 = vpop.permute.xlu0 %150
    %v153 = vperm.slane %v112, 4
    %v154 = vmul.f32 %v151, %v153
    %v155 = vadd.f32 %v148, %v154
    %156 = vset.pattern.permute.xlu0 5
    %157 = vperm.xlu0 %156, %v113
    %v158 = vpop.permute.xlu0 %157
    %v160 = vperm.slane %v112, 5
    %v161 = vmul.f32 %v158, %v160
    %v162 = vadd.f32 %v155, %v161
    %v163 = vsub.f32 0.0, %v162
    %v164 = vmul.f32 %v163, 1.442695
    %v165 = vpow.pop %v164
    %v166 = vadd.f32 %v165, 1.0
    %v167 = vrcp.pop %v166
    %v168 = vld [vmem:[%s5] sm:$0x1]
    %v169 = vld [vmem:[#allocation2] sm:$0x1]
    %171 = vset.pattern.permute.xlu0 0
    %172 = vperm.xlu0 %171, %v169
    %v173 = vpop.permute.xlu0 %172
    %v175 = vperm.slane %v173, 0
    %177 = vset.pattern.permute.xlu0 0
    %178 = vperm.xlu0 %177, %v168
    %v179 = vpop.permute.xlu0 %178
    %v181 = vperm.slane %v179, 0
    %v182 = vmul.f32 %v181, %v167
    %v183 = vadd.f32 %v175, %v182
    %184 = vset.pattern.permute.xlu0 1
    %185 = vperm.xlu0 %184, %v168
    %v186 = vpop.permute.xlu0 %185
    %v188 = vperm.slane %v186, 0
    %v189 = vmul.f32 %v188, %v167
    %v191 = vrot.slane %v189, 1
    %v193 = vadd.f32 %v183, %v191
    %194 = vset.pattern.permute.xlu0 2
    %195 = vperm.xlu0 %194, %v168
    %v196 = vpop.permute.xlu0 %195
    %v198 = vperm.slane %v196, 0
    %v199 = vmul.f32 %v198, %v167
    %v201 = vrot.slane %v199, 2
    %v203 = vadd.f32 %v193, %v201
    %204 = vset.pattern.permute.xlu0 3
    %205 = vperm.xlu0 %204, %v168
    %v206 = vpop.permute.xlu0 %205
    %v208 = vperm.slane %v206, 0
    %v209 = vmul.f32 %v208, %v167
    %v211 = vrot.slane %v209, 3
    %v213 = vadd.f32 %v203, %v211
    %v214 = vsub.f32 0.0, %v213
    %v215 = vmul.f32 %v214, 1.442695
    %v216 = vpow.pop %v215
    %v217 = vadd.f32 %v216, 1.0
    %v218 = vrcp.pop %v217
    %219 = vst [vmem:[#allocation6] sm:$0x1] %v218
    // Predicated region
    $region34: #{tpu_custom_call.1} parent=1 // pred_check
      _
    $region35: #{tpu_custom_call.1} parent=1 // pred_check_branch
      %221 = sbr.rel (0) target = $region37
    $region36: #{tpu_custom_call.1} parent=1 // pred_region
      %223 = vsyncadd [#allocation5], 0
      %s225 = sshll.u32 [#allocation6], 4
      %s226 = int_to_ptr.vmem [resolvable:$true] %s225
      %s227 = sshll.u32 %s7, 4
      %s228 = int_to_ptr.hbm [resolvable:$true] %s227
      %230 = dma.vmem_to_hbm [thread:$0]  %s226, 16, %s228, [#allocation5]
    $region37: #{tpu_custom_call.1} parent=1 // pred_fallthru
      _
    // Predicated region
    $region38: #{tpu_custom_call.1} parent=1 // pred_check
      _
    $region39: #{tpu_custom_call.1} parent=1 // pred_check_branch
      %232 = sbr.rel (0) target = $region41
    $region40: #{tpu_custom_call.1} parent=1 // pred_region
      %234 = dma.done [#allocation5], 16
    $region41: #{tpu_custom_call.1} parent=1 // pred_fallthru
      _
    %235 = vsyncpa [#allocation4], 1
    %236 = vsyncpa [#allocation5], 1

</llo_original>
